<compile_context>
chip_gen: v7x
topology: tpu7x:2x2x1
jax: 0.10.0
libtpu: 0.0.40
codegen_flags: <defaults>
</compile_context>

<pallas_src>
import functools

import jax
import jax.numpy as jnp
from jax import lax
from jax.experimental import pallas as pl
from jax.experimental.pallas import tpu as pltpu


# ---------------------------------------------------------------------------
# Fused kernel: GAP (tiled over HW, masked ragged tail) + linear head + argmax
# ---------------------------------------------------------------------------
def _fused_forward_predict_kernel(x_ref, w_ref, b_ref, logits_ref, pred_ref,
                                  acc_ref, *, inv_hw, hw_true, hw_tile,
                                  need_hw_mask):
    hw_i = pl.program_id(1)

    @pl.when(hw_i == 0)
    def _init():
        acc_ref[...] = jnp.zeros_like(acc_ref)

    # Raw partial sums (f32 accumulation works for bf16/f32 x); the single
    # 1/HW scale is applied once in the finalize step, not per tile.
    x = x_ref[...].astype(jnp.float32)                 # [b_tile, C, hw_tile]
    if need_hw_mask:                                   # static trace-time flag
        lane = lax.broadcasted_iota(jnp.int32, x.shape, 2)
        valid = (hw_i * hw_tile + lane) < hw_true
        x = jnp.where(valid, x, 0.0)                   # zero the OOB lanes
    acc_ref[...] += jnp.sum(x, axis=-1)                # XLU reduce: free under DMA

    @pl.when(hw_i == pl.num_programs(1) - 1)
    def _finalize():
        pooled = acc_ref[...] * inv_hw                 # [b_tile, C]
        logits = jnp.dot(pooled, w_ref[...],
                         preferred_element_type=jnp.float32)   # MXU
        logits = logits + b_ref[...]                   # broadcast [1, K]
        logits_ref[...] = logits.astype(logits_ref.dtype)

        # argmax(softmax(logits)) == argmax(logits); first-index tie-break like
        # torch.argmax.  NaN rows pick the first NaN index (stays in-range).
        bt, k = logits.shape
        ids = lax.broadcasted_iota(jnp.int32, (bt, k), 1)
        big = jnp.int32(k)
        is_max = logits == jnp.max(logits, axis=1, keepdims=True)
        first_max = jnp.min(jnp.where(is_max, ids, big), axis=1, keepdims=True)
        nan_mask = logits != logits
        first_nan = jnp.min(jnp.where(nan_mask, ids, big), axis=1, keepdims=True)
        pred_ref[...] = jnp.where(first_nan < big, first_nan, first_max)


# ---------------------------------------------------------------------------
# Tiling helpers (generation-aware, padding-exact VMEM accounting)
# ---------------------------------------------------------------------------
def _round_up(x: int, m: int) -> int:
    return ((x + m - 1) // m) * m


def _vmem_capacity_bytes() -> int:
    try:
        cap = getattr(pltpu.get_tpu_info(), "vmem_capacity_bytes", None)
        if cap:
            return int(cap)
    except Exception:
        pass
    return 64 << 20           # conservative default: v7x per-TensorCore VMEM


def _budgets(x_block_budget_override=None):
    """(per-x-block padded footprint budget, vmem_limit cap) for this chip."""
    cap = _vmem_capacity_bytes()
    if cap >= (96 << 20):                     # v5e / v6e: 128 MiB VMEM
        budget, limit_cap = 20 << 20, 96 << 20
    else:                                     # v7x: 64 MiB VMEM, 3.2 TB/s HBM
        budget, limit_cap = 11 << 20, 46 << 20
    if x_block_budget_override is not None:
        budget = int(x_block_budget_override)
    return budget, limit_cap


def _pick_tiles(B, C, HW, itemsize, x_block_budget):
    """Pick (b_tile, hw_tile).

    b_tile divides B and is a multiple of 8 (or the full B) so the (b_tile, K)
    output block is sublane-legal.  hw_tile is the largest multiple of 128
    whose *padded* x-block footprint (C padded to the dtype's sublane packing)
    fits the budget.  Score: reach ~2 MiB DMA payload first, then prefer >=2
    batch blocks (two v7x TensorCores), then minimize grid steps.
    """
    sub = max(8, 32 // itemsize)              # sublane packing: 8 f32 / 16 bf16
    pad_c = _round_up(C, sub)
    hw_full = _round_up(HW, 128)

    b_cands = [d for d in range(1, B + 1)
               if B % d == 0 and (d % 8 == 0 or d == B)]

    best, best_score = None, None
    for b_t in b_cands:
        row_bytes = b_t * pad_c * itemsize
        hw_t = min(hw_full, (x_block_budget // row_bytes) // 128 * 128)
        if hw_t < 128:
            continue
        payload = b_t * C * min(hw_t, HW) * itemsize    # true HBM bytes / block
        n_b, n_hw = B // b_t, pl.cdiv(HW, hw_t)
        score = (min(payload, 2 << 20),    # reach the HBM-roofline knee first,
                 int(n_b >= 2),            # then feed both v7x TensorCores,
                 -(n_b * n_hw),            # then fewer 0.35us grid steps,
                 payload)
        if best_score is None or score > best_score:
            best, best_score = (b_t, hw_t), score

    if best is None:
        # TODO(synk): channels are not tiled; for very large C a C-tiling (or a
        # B*C-collapsed layout) would be needed to respect VMEM.
        best = (b_cands[0], 128)
    return best


# ---------------------------------------------------------------------------
# Python wrapper
# ---------------------------------------------------------------------------
class VertebraeClassifierPallas:
    """Concrete Pallas-backed classifier: GAP + linear head + fused predict."""

    def __init__(self, in_channels: int, num_classes: int, key,
                 x_block_budget_bytes=None):
        self.num_classes = num_classes
        self._x_block_budget = x_block_budget_bytes
        kw, _ = jax.random.split(key)
        # Deterministic synthetic parameters (no checkpoint loading).
        self.w = (jax.random.normal(kw, (in_channels, num_classes),
                                    dtype=jnp.float32) * 0.1)
        self.b = jnp.zeros((1, num_classes), dtype=jnp.float32)

    def _run(self, x):
        """Single fused pallas_call -> (logits [B,K] f32, preds [B] int32)."""
        B, C, H, W = x.shape
        HW = H * W
        K = self.num_classes
        x_flat = x.reshape(B, C, HW)                   # free NCHW view
        itemsize = jnp.dtype(x.dtype).itemsize

        x_budget, vmem_cap = _budgets(self._x_block_budget)
        b_tile, hw_tile = _pick_tiles(B, C, HW, itemsize, x_budget)
        n_hw = pl.cdiv(HW, hw_tile)
        grid = (B // b_tile, n_hw)
        need_hw_mask = (n_hw * hw_tile) != HW          # ragged last HW block

        kernel = functools.partial(
            _fused_forward_predict_kernel,
            inv_hw=1.0 / float(HW), hw_true=HW, hw_tile=hw_tile,
            need_hw_mask=need_hw_mask)

        # Explicit VMEM budget: double-buffered padded x block + params/outputs
        # + headroom, capped per generation (v7x 64 MiB physical VMEM).
        sub = max(8, 32 // itemsize)
        x_footprint = b_tile * _round_up(C, sub) * hw_tile * itemsize
        vmem_limit = int(min(max(2 * x_footprint + (4 << 20), 16 << 20),
                             vmem_cap))

        cost = pl.CostEstimate(
            flops=B * C * HW + 2 * B * C * K,          # GAP adds + head matmul
            transcendentals=0,
            bytes_accessed=(x_flat.size * itemsize
                            + (C * K + K) * 4          # W, b
                            + B * K * 4 + B * 4))      # logits, preds

        logits, pred = pl.pallas_call(
            kernel,
            out_shape=(
                jax.ShapeDtypeStruct((B, K), jnp.float32),
                jax.ShapeDtypeStruct((B, 1), jnp.int32),
            ),
            grid_spec=pltpu.PrefetchScalarGridSpec(
                num_scalar_prefetch=0,
                grid=grid,
                in_specs=[
                    pl.BlockSpec((b_tile, C, hw_tile),
                                 lambda bi, hi: (bi, 0, hi)),
                    pl.BlockSpec((C, K), lambda bi, hi: (0, 0)),
                    pl.BlockSpec((1, K), lambda bi, hi: (0, 0)),
                ],
                out_specs=(
                    pl.BlockSpec((b_tile, K), lambda bi, hi: (bi, 0)),
                    pl.BlockSpec((b_tile, 1), lambda bi, hi: (bi, 0)),
                ),
                scratch_shapes=[pltpu.VMEM((b_tile, C), jnp.float32)],
            ),
            compiler_params=pltpu.CompilerParams(
                dimension_semantics=("parallel", "arbitrary"),
                vmem_limit_bytes=vmem_limit),
            cost_estimate=cost,
        )(x_flat, self.w, self.b)
        return logits, pred.reshape(B)

    def forward(self, x):
        return self._run(x)[0]

    def predict(self, x):
        # int32 (torch.argmax would return int64) — documented, cosmetic.
        return self._run(x)[1]

    # TODO(synk): topk_predictions / compute_loss / load_weights involve file
    # I/O and external criterion modules; no Pallas equivalent, omitted.
    # TODO(synk): for B < 2*b_tile on v7x, the second TensorCore idles; the
    # HW-split / per-core partial-sum variant from the review is not done.


# ---------------------------------------------------------------------------
# Self-test
# ---------------------------------------------------------------------------
if __name__ == "__main__":
    key = jax.random.PRNGKey(0)
    kp = jax.random.fold_in(key, 1)

    num_classes = 8
    C = 4
    model = VertebraeClassifierPallas(in_channels=C, num_classes=num_classes,
                                      key=kp)
    # Same weights (same key), but a tiny forced block budget so the
    # multi-step (accumulating) HW reduction path is exercised on every chip.
    model_small = VertebraeClassifierPallas(in_channels=C,
                                            num_classes=num_classes, key=kp,
                                            x_block_budget_bytes=64 << 10)

    def check(mdl, B, H, W, seed, atol=1e-5):
        kx = jax.random.fold_in(key, seed)
        x = jax.random.normal(kx, (B, C, H, W), dtype=jnp.float32)
        logits = jax.block_until_ready(mdl.forward(x))
        preds = jax.block_until_ready(mdl.predict(x))
        pooled_ref = x.reshape(B, C, H * W).mean(axis=-1)
        logits_ref = pooled_ref @ mdl.w + mdl.b
        preds_ref = jnp.argmax(jax.nn.softmax(logits_ref, axis=1), axis=1)
        assert jnp.allclose(logits, logits_ref, atol=atol), \
            f"logits mismatch for shape {(B, C, H, W)}"
        assert jnp.array_equal(preds, preds_ref.astype(preds.dtype)), \
            f"pred mismatch for shape {(B, C, H, W)}"

    # 1) toy spec shape  2) bigger spatial  3) bigger batch
    check(model, 2, 16, 16, seed=100)
    check(model, 2, 32, 96, seed=101)
    check(model, 16, 32, 96, seed=102)
    # 4) HW not a multiple of 128 -> ragged last block, in-kernel lane masking
    check(model, 2, 10, 10, seed=103)
    # 5) odd batch (full-B block) + ragged HW
    check(model, 3, 18, 18, seed=104)
    # 6) forced small block budget -> multi-step accumulating reduction + mask
    check(model_small, 2, 65, 65, seed=105, atol=1e-4)

    # bf16 input path (halves HBM bytes; accumulation stays f32 in-kernel).
    B, H, W = 2, 16, 16
    kx = jax.random.fold_in(key, 200)
    x32 = jax.random.normal(kx, (B, C, H, W), dtype=jnp.float32)
    logits_bf16 = jax.block_until_ready(model.forward(x32.astype(jnp.bfloat16)))
    pooled_ref = x32.reshape(B, C, H * W).mean(axis=-1)
    logits_ref = pooled_ref @ model.w + model.b
    assert jnp.allclose(logits_bf16, logits_ref, atol=3e-2), "bf16 logits mismatch"

    print("KERNEL_OK")
</pallas_src>

<mosaic_0001>
module attributes {stable_mosaic.version = 11 : i64} {
  func.func @_fused_forward_predict_kernel(%arg0: i32, %arg1: i32, %arg2: memref<2x4x256xf32, #tpu.memory_space<vmem>>, %arg3: memref<4x8xf32, #tpu.memory_space<vmem>>, %arg4: memref<1x8xf32, #tpu.memory_space<vmem>>, %arg5: memref<2x8xf32, #tpu.memory_space<vmem>>, %arg6: memref<2x1xi32, #tpu.memory_space<vmem>>, %arg7: memref<2x4xf32, #tpu.memory_space<vmem>>) attributes {dimension_semantics = [#tpu.dimension_semantics<parallel>, #tpu.dimension_semantics<arbitrary>], iteration_bounds = array<i64: 1, 1>, scalar_prefetch = 0 : i64, scratch_operands = 1 : i64, tpu.core_type = #tpu.core_type<tc>, window_params = [{transform_indices = @transform_0, window_bounds = array<i64: 2, 4, 256>}, {pipeline_mode = #tpu.pipeline_mode<synchronous>, transform_indices = @transform_1, window_bounds = array<i64: 4, 8>}, {pipeline_mode = #tpu.pipeline_mode<synchronous>, transform_indices = @transform_2, window_bounds = array<i64: 1, 8>}, {transform_indices = @transform_3, window_bounds = array<i64: 2, 8>}, {transform_indices = @transform_4, window_bounds = array<i64: 2, 1>}]} {
    %c0_i32 = arith.constant 0 : i32
    %0 = arith.cmpi eq, %arg1, %c0_i32 : i32
    %1 = arith.extui %0 : i1 to i32
    %c0_i32_0 = arith.constant 0 : i32
    %2 = arith.cmpi ne, %1, %c0_i32_0 : i32
    scf.if %2 {
      %cst_9 = arith.constant 0.000000e+00 : f32
      %11 = vector.broadcast %cst_9 : f32 to vector<2x4xf32>
      %c0_10 = arith.constant 0 : index
      %c0_11 = arith.constant 0 : index
      %12 = vector.load %arg7[%c0_10, %c0_11] : memref<2x4xf32, #tpu.memory_space<vmem>>, vector<2x4xf32>
      tpu.vector_store %arg7[%c0_10, %c0_11], %11 {strides = array<i32>} : memref<2x4xf32, #tpu.memory_space<vmem>>, vector<2x4xf32>,
    } else {
    }
    %c0 = arith.constant 0 : index
    %c0_1 = arith.constant 0 : index
    %c0_2 = arith.constant 0 : index
    %3 = vector.load %arg2[%c0, %c0_1, %c0_2] : memref<2x4x256xf32, #tpu.memory_space<vmem>>, vector<2x4x256xf32>
    %c0_3 = arith.constant 0 : index
    %c0_4 = arith.constant 0 : index
    %4 = vector.load %arg7[%c0_3, %c0_4] : memref<2x4xf32, #tpu.memory_space<vmem>>, vector<2x4xf32>
    %cst = arith.constant dense<0.000000e+00> : vector<2x4xf32>
    %5 = vector.multi_reduction <add>, %3, %cst [2] : vector<2x4x256xf32> to vector<2x4xf32>
    %6 = arith.addf %4, %5 : vector<2x4xf32>
    %c0_5 = arith.constant 0 : index
    %c0_6 = arith.constant 0 : index
    %7 = vector.load %arg7[%c0_5, %c0_6] : memref<2x4xf32, #tpu.memory_space<vmem>>, vector<2x4xf32>
    tpu.vector_store %arg7[%c0_5, %c0_6], %6 {strides = array<i32>} : memref<2x4xf32, #tpu.memory_space<vmem>>, vector<2x4xf32>,
    %c0_i32_7 = arith.constant 0 : i32
    %8 = arith.cmpi eq, %arg1, %c0_i32_7 : i32
    %9 = arith.extui %8 : i1 to i32
    %c0_i32_8 = arith.constant 0 : i32
    %10 = arith.cmpi ne, %9, %c0_i32_8 : i32
    scf.if %10 {
      %c0_9 = arith.constant 0 : index
      %c0_10 = arith.constant 0 : index
      %11 = vector.load %arg7[%c0_9, %c0_10] : memref<2x4xf32, #tpu.memory_space<vmem>>, vector<2x4xf32>
      %cst_11 = arith.constant 3.906250e-03 : f32
      %12 = vector.broadcast %cst_11 : f32 to vector<2x4xf32>
      %13 = arith.mulf %11, %12 : vector<2x4xf32>
      %c0_12 = arith.constant 0 : index
      %c0_13 = arith.constant 0 : index
      %14 = vector.load %arg3[%c0_12, %c0_13] : memref<4x8xf32, #tpu.memory_space<vmem>>, vector<4x8xf32>
      %cst_14 = arith.constant dense<0.000000e+00> : vector<2x8xf32>
      %15 = tpu.matmul %13, %14, %cst_14 {dimension_numbers = #tpu.dot_dimension_numbers<[1], [0], [0], [1], [0, 0, 1, 1], [], []>} : vector<2x4xf32>, vector<4x8xf32>, vector<2x8xf32> -> vector<2x8xf32>
      %c0_15 = arith.constant 0 : index
      %c0_16 = arith.constant 0 : index
      %16 = vector.load %arg4[%c0_15, %c0_16] : memref<1x8xf32, #tpu.memory_space<vmem>>, vector<1x8xf32>
      %17 = vector.broadcast %16 : vector<1x8xf32> to vector<2x8xf32>
      %18 = arith.addf %15, %17 : vector<2x8xf32>
      %c0_17 = arith.constant 0 : index
      %c0_18 = arith.constant 0 : index
      %19 = vector.load %arg5[%c0_17, %c0_18] : memref<2x8xf32, #tpu.memory_space<vmem>>, vector<2x8xf32>
      tpu.vector_store %arg5[%c0_17, %c0_18], %18 {strides = array<i32>} : memref<2x8xf32, #tpu.memory_space<vmem>>, vector<2x8xf32>,
      %20 = tpu.iota {dimensions = array<i32: 1>} : vector<2x8xi32>
      %cst_19 = arith.constant dense<0xFF800000> : vector<2xf32>
      %21 = vector.multi_reduction <maximumf>, %18, %cst_19 [1] : vector<2x8xf32> to vector<2xf32>
      %22 = vector.shape_cast %21 : vector<2xf32> to vector<2x1xf32>
      %23 = vector.broadcast %22 : vector<2x1xf32> to vector<2x8xf32>
      %24 = arith.cmpf oeq, %18, %23 : vector<2x8xf32>
      %c8_i32 = arith.constant 8 : i32
      %25 = vector.broadcast %c8_i32 : i32 to vector<2x8xi32>
      %26 = arith.select %24, %20, %25 : vector<2x8xi1>, vector<2x8xi32>
      %cst_20 = arith.constant dense<2147483647> : vector<2xi32>
      %27 = vector.multi_reduction <minsi>, %26, %cst_20 [1] : vector<2x8xi32> to vector<2xi32>
      %28 = vector.shape_cast %27 : vector<2xi32> to vector<2x1xi32>
      %29 = arith.cmpf one, %18, %18 : vector<2x8xf32>
      %c8_i32_21 = arith.constant 8 : i32
      %30 = vector.broadcast %c8_i32_21 : i32 to vector<2x8xi32>
      %31 = arith.select %29, %20, %30 : vector<2x8xi1>, vector<2x8xi32>
      %cst_22 = arith.constant dense<2147483647> : vector<2xi32>
      %32 = vector.multi_reduction <minsi>, %31, %cst_22 [1] : vector<2x8xi32> to vector<2xi32>
      %33 = vector.shape_cast %32 : vector<2xi32> to vector<2x1xi32>
      %c8_i32_23 = arith.constant 8 : i32
      %34 = vector.broadcast %c8_i32_23 : i32 to vector<2x1xi32>
      %35 = arith.cmpi slt, %33, %34 : vector<2x1xi32>
      %36 = arith.select %35, %33, %28 : vector<2x1xi1>, vector<2x1xi32>
      %c0_24 = arith.constant 0 : index
      %c0_25 = arith.constant 0 : index
      %37 = vector.load %arg6[%c0_24, %c0_25] : memref<2x1xi32, #tpu.memory_space<vmem>>, vector<2x1xi32>
      tpu.vector_store %arg6[%c0_24, %c0_25], %36 {strides = array<i32>} : memref<2x1xi32, #tpu.memory_space<vmem>>, vector<2x1xi32>,
    } else {
    }
    return
  }
  func.func @transform_0(%arg0: i32, %arg1: i32) -> (i32, i32, i32) {
    %c0_i32 = arith.constant 0 : i32
    %c0_i32_0 = arith.constant 0 : i32
    return %arg0, %c0_i32, %arg1 : i32, i32, i32
  }
  func.func @transform_1(%arg0: i32, %arg1: i32) -> (i32, i32) {
    %c0_i32 = arith.constant 0 : i32
    %c0_i32_0 = arith.constant 0 : i32
    %c0_i32_1 = arith.constant 0 : i32
    return %c0_i32, %c0_i32_0 : i32, i32
  }
  func.func @transform_2(%arg0: i32, %arg1: i32) -> (i32, i32) {
    %c0_i32 = arith.constant 0 : i32
    %c0_i32_0 = arith.constant 0 : i32
    %c0_i32_1 = arith.constant 0 : i32
    return %c0_i32, %c0_i32_0 : i32, i32
  }
  func.func @transform_3(%arg0: i32, %arg1: i32) -> (i32, i32) {
    %c0_i32 = arith.constant 0 : i32
    %c0_i32_0 = arith.constant 0 : i32
    return %arg0, %c0_i32 : i32, i32
  }
  func.func @transform_4(%arg0: i32, %arg1: i32) -> (i32, i32) {
    %c0_i32 = arith.constant 0 : i32
    %c0_i32_0 = arith.constant 0 : i32
    return %arg0, %c0_i32 : i32, i32
  }
}

</mosaic_0001>

<llo_original>
// kernel: tpu_custom_call.1
$region0: #{tpu_custom_call.1}
  #allocation0 [shape = 'u32[]', space=smem, size = 0x4, offset = 0x4, fixed_abs, tag = 'smem constant byte address 0x4 - core index']
  #allocation1 [shape = 'u32[144,128]{1,0:T(1,128)}', space=vmem, size = 0x12000, scoped, tag = 'internal scratch']
  #allocation2 [shape = 'f32[2,4]{1,0:T(2,128)}', space=vmem, size = 0x400, scoped, tag = 'scratch operand']
  %s0 = inlined_call_operand.hbm [shape: f32[2,4,256], index: 0, kind: input, shape index: {}]
  %s1 = inlined_call_operand.hbm [shape: f32[4,8], index: 1, kind: input, shape index: {}]
  %s2 = inlined_call_operand.vmem [shape: f32[1,8], index: 2, kind: input, shape index: {}]
  %s3 = inlined_call_operand.hbm [shape: f32[2,8], index: 3, kind: output, shape index: {0}]
  %s4 = inlined_call_operand.vmem [shape: s32[2,1], index: 4, kind: output, shape index: {1}]
  %5 = xla_tuple %s3, %s4
  %s6 = sld [smem:[#allocation0]]
  $region46: #{tpu_custom_call.1} parent=0
    _
  %s8 = ssub.s32 1, %s6
  %s9 = scalar_select 0, %s8, %s6
  $region1: #{tpu_custom_call.1} parent=0
    #allocation3 [shape = 'u8[8192]{0}', space=vmem, size = 0x2000, scoped, tag = 'input window, operand 0, single buffered']
    #allocation4 [shape = 's32[1]{0}', space=sflag, size = 0x4, scoped, tag = 'scoped memory for tpu_custom_call.1']
    #allocation5 [shape = 's32[1]{0}', space=sflag, size = 0x4, scoped, tag = 'scoped memory for tpu_custom_call.1']
    #allocation6 [shape = 'u8[2048]{0}', space=vmem, size = 0x800, scoped, tag = 'input window, operand 1, single buffered']
    #allocation7 [shape = 's32[1]{0}', space=sflag, size = 0x4, scoped, tag = 'scoped memory for tpu_custom_call.1']
    #allocation8 [shape = 'u8[1024]{0}', space=vmem, size = 0x400, scoped, tag = 'output window, operand 0, single buffered']
    %10 = vsyncpa [#allocation4], 0
    %11 = vsyncpa [#allocation7], 0
    %12 = vsyncpa [#allocation5], 0
    // Predicated region
    $region2: #{tpu_custom_call.1} parent=1 // pred_check
      _
    $region3: #{tpu_custom_call.1} parent=1 // pred_check_branch
      %14 = sbr.rel (0) target = $region5
    $region4: #{tpu_custom_call.1} parent=1 // pred_region
      %s16 = ssub.s32 256, 256
      %17 = vsyncadd [#allocation4], %s16
      %s18 = sshll.u32 [#allocation3], 4
      %s19 = int_to_ptr.vmem [resolvable:$true] %s18
      %24 = dma.hbm_to_vmem [thread:$0]  %s0, 256, %s19, [#allocation4], 128, 128, 8
    $region5: #{tpu_custom_call.1} parent=1 // pred_fallthru
      _
    // Predicated region
    $region6: #{tpu_custom_call.1} parent=1 // pred_check
      _
    $region7: #{tpu_custom_call.1} parent=1 // pred_check_branch
      %26 = sbr.rel (0) target = $region9
    $region8: #{tpu_custom_call.1} parent=1 // pred_region
      %s28 = ssub.s32 64, 64
      %29 = vsyncadd [#allocation7], %s28
      %s31 = sshll.u32 [#allocation6], 4
      %s32 = int_to_ptr.vmem [resolvable:$true] %s31
      %34 = dma.hbm_to_vmem [thread:$0]  %s1, 64, %s32, [#allocation7]
    $region9: #{tpu_custom_call.1} parent=1 // pred_fallthru
      _
    // Predicated region
    $region10: #{tpu_custom_call.1} parent=1 // pred_check
      _
    $region11: #{tpu_custom_call.1} parent=1 // pred_check_branch
      %36 = sbr.rel (0) target = $region13
    $region12: #{tpu_custom_call.1} parent=1 // pred_region
      _
    $region13: #{tpu_custom_call.1} parent=1 // pred_fallthru
      _
    // Predicated region
    $region14: #{tpu_custom_call.1} parent=1 // pred_check
      _
    $region15: #{tpu_custom_call.1} parent=1 // pred_check_branch
      %38 = sbr.rel (0) target = $region17
    $region16: #{tpu_custom_call.1} parent=1 // pred_region
      %39 = dma.done [#allocation4], 256
    $region17: #{tpu_custom_call.1} parent=1 // pred_fallthru
      _
    // Predicated region
    $region18: #{tpu_custom_call.1} parent=1 // pred_check
      _
    $region19: #{tpu_custom_call.1} parent=1 // pred_check_branch
      %41 = sbr.rel (0) target = $region21
    $region20: #{tpu_custom_call.1} parent=1 // pred_region
      %42 = dma.done [#allocation7], 64
    $region21: #{tpu_custom_call.1} parent=1 // pred_fallthru
      _
    %p43 = scmp.eq.s32.totalorder 0, 0
    // Predicated region
    $region22: #{tpu_custom_call.1} parent=1 // pred_check
      %p44 = pneg %p43
    $region23: #{tpu_custom_call.1} parent=1 // pred_check_branch
      %46 = sbr.rel (%p44) target = $region25
    $region24: #{tpu_custom_call.1} parent=1 // pred_region
      %vm47 = vcmask 25600
      %48 = vst.msk [vmem:[#allocation2] sm:$0x3] %vm47, 0.0
    $region25: #{tpu_custom_call.1} parent=1 // pred_fallthru
      _
    %v49 = vld [vmem:[#allocation3] sm:$0xff]
    %v50 = vld [vmem:[#allocation3 + $0x8] sm:$0xff]
    %v51 = vld [vmem:[#allocation2] sm:$0x3]
    %v54 = vcombine.high %v49, %v49
    %v55 = vcombine.high %v50, %v50
    %vm58 = vcmask 1043456
    %v59 = vsel %vm58, %v49, 0.0
    %v60 = vsel %vm58, %v54, 0.0
    %v61 = vadd.f32 %v59, %v60
    %62 = vadd.xlane.f32.xlu0 %v61
    %v63 = vpop.xlane.xlu0 %62
    %v64 = vsel %vm58, %v50, 0.0
    %v65 = vsel %vm58, %v55, 0.0
    %v66 = vadd.f32 %v64, %v65
    %67 = vadd.xlane.f32.xlu0 %v66
    %v68 = vpop.xlane.xlu0 %67
    %v71 = vlaneseq
    %v72 = vand.u32 %v71, 127
    %v73 = vlaneseq
    %v74 = vshrl.u32 %v73, 7
    %v75 = vsub.s32 %v72, %v74
    %v76 = vrot.slane %v63, %v75
    %v77 = vlaneseq
    %v78 = vshrl.u32 %v77, 7
    %v79 = vsub.s32 %v72, %v78
    %v80 = vrot.slane %v68, %v79
    %vm81 = vcmask 1041409
    %v82 = vsel %vm81, %v80, %v76
    %v84 = vadd.f32 %v51, %v82
    %vm85 = vcmask 25600
    %86 = vst.msk [vmem:[#allocation2] sm:$0x3] %vm85, %v84
    // Predicated region
    $region26: #{tpu_custom_call.1} parent=1 // pred_check
      %p87 = pneg %p43
    $region27: #{tpu_custom_call.1} parent=1 // pred_check_branch
      %89 = sbr.rel (%p87) target = $region29
    $region28: #{tpu_custom_call.1} parent=1 // pred_region
      %v90 = vld [vmem:[#allocation2] sm:$0x3]
      %v91 = vmul.f32 %v90, 0.00390625
      %v92 = vld [vmem:[#allocation6] sm:$0xf]
      %v93 = vld [vmem:[%s2] sm:$0x1]
      %v95 = vlaneseq
      %v96 = vshrl.u32 %v95, 7
      %v97 = vsub.s32 0, %v96
      %v98 = vrot.slane %v93, %v97
      %vm100 = vcmask 31744
      %v102 = vsel %vm100, %v91, 0
      %v105 = vsel %vm58, %v92, 0
      %107 = vmatprep.subr.mxu0 0.0
      %108 = vmatpush1.msra.mxu0 %v105
      %109 = vmatprep.subr.mxu0 0.0
      %110 = vmatpush1.msra.mxu0 0.0
      %111 = vmatprep.subr.mxu0 0.0
      %112 = vmatpush1.msra.mxu0 0.0
      %113 = vmatprep.subr.mxu0 0.0
      %114 = vmatpush1.msra.mxu0 0.0
      %115 = vmatprep.subr.mxu0 0.0
      %116 = vmatpush1.msra.mxu0 0.0
      %117 = vmatprep.subr.mxu0 0.0
      %118 = vmatpush1.msra.mxu0 0.0
      %119 = vmatprep.subr.mxu0 0.0
      %120 = vmatpush1.msra.mxu0 0.0
      %121 = vmatprep.subr.mxu0 0.0
      %122 = vmatpush1.msra.mxu0 0.0
      %123 = vmatprep.subr.mxu0 0.0
      %124 = vmatpush1.msra.mxu0 0.0
      %125 = vmatprep.subr.mxu0 0.0
      %126 = vmatpush1.msra.mxu0 0.0
      %127 = vmatprep.subr.mxu0 0.0
      %128 = vmatpush1.msra.mxu0 0.0
      %129 = vmatprep.subr.mxu0 0.0
      %130 = vmatpush1.msra.mxu0 0.0
      %131 = vmatprep.subr.mxu0 0.0
      %132 = vmatpush1.msra.mxu0 0.0
      %133 = vmatprep.subr.mxu0 0.0
      %134 = vmatpush1.msra.mxu0 0.0
      %135 = vmatprep.subr.mxu0 0.0
      %136 = vmatpush1.msra.mxu0 0.0
      %137 = vmatprep.subr.mxu0 0.0
      %138 = vmatpush1.msra.mxu0 0.0
      %139 = vmatprep.subr.mxu0 0.0
      %140 = vmatpush1.msra.mxu0 0.0
      %141 = vmatprep.subr.mxu0 0.0
      %142 = vmatpush1.msra.mxu0 0.0
      %143 = vmatprep.subr.mxu0 0.0
      %144 = vmatpush1.msra.mxu0 0.0
      %145 = vmatprep.subr.mxu0 0.0
      %146 = vmatpush1.msra.mxu0 0.0
      %147 = vmatprep.subr.mxu0 0.0
      %148 = vmatpush1.msra.mxu0 0.0
      %149 = vmatprep.subr.mxu0 0.0
      %150 = vmatpush1.msra.mxu0 0.0
      %151 = vmatprep.subr.mxu0 0.0
      %152 = vmatpush1.msra.mxu0 0.0
      %153 = vmatprep.subr.mxu0 0.0
      %154 = vmatpush1.msra.mxu0 0.0
      %155 = vmatprep.subr.mxu0 0.0
      %156 = vmatpush1.msra.mxu0 0.0
      %157 = vmatprep.subr.mxu0 0.0
      %158 = vmatpush1.msra.mxu0 0.0
      %159 = vmatprep.subr.mxu0 0.0
      %160 = vmatpush1.msra.mxu0 0.0
      %161 = vmatprep.subr.mxu0 0.0
      %162 = vmatpush1.msra.mxu0 0.0
      %163 = vmatprep.subr.mxu0 0.0
      %164 = vmatpush1.msra.mxu0 0.0
      %165 = vmatprep.subr.mxu0 0.0
      %166 = vmatpush1.msra.mxu0 0.0
      %167 = vmatprep.subr.mxu0 0.0
      %168 = vmatpush1.msra.mxu0 0.0
      %169 = vmatprep.subr.mxu0 0.0
      %170 = vmatpush1.msra.mxu0 0.0
      %171 = vmatprep.mubr.f32.mxu0 0.0
      %172 = vmatmul.mubr.f32.gmra.mrb[0].mxu0 %v102
      %v173 = vpop.f32.mrb[0].mxu0
      %v174 = vadd.f32 %v98, %v173
      %v175 = vpop.f32.mrb[0].mxu0
      %176 = vdwg.mxu0
      %vm177 = vcmask 58368
      %178 = vst.msk [vmem:[#allocation8] sm:$0x3] %vm177, %v174
      %v179 = vsel %vm177, %v174, -inf
      %180 = vmax.xlane.f32.xlu0 %v179
      %v181 = vpop.xlane.xlu0 %180
      %vm182 = vcmp.eq.f32.partialorder %v174, %v181
      %v183 = vsel %vm182, %v72, 8
      %v184 = vsel %vm177, %v183, 2147483647
      %v185 = vand.u32 %v184, 65535
      %v186 = vshra.s32 %v184, 16
      %v187 = vcvt.s32.f32 %v185
      %v188 = vcvt.s32.f32 %v186
      %189 = vmin.xlane.f32.xlu0 %v188
      %v190 = vpop.xlane.xlu0 %189
      %vm191 = vcmp.eq.f32.partialorder %v188, %v190
      %v192 = vsel %vm191, %v187, inf
      %193 = vmin.xlane.f32.xlu0 %v192
      %v194 = vpop.xlane.xlu0 %193
      %v195 = vcvt.f32.s32 %v194
      %v196 = vcvt.f32.s32 %v190
      %v197 = vshll.u32 %v196, 16
      %v198 = vadd.s32 %v197, %v195
      %vm199 = vcmp.ne.f32.partialorder %v174, %v174
      %v200 = vsel %vm199, %v72, 8
      %v201 = vsel %vm177, %v200, 2147483647
      %v202 = vand.u32 %v201, 65535
      %v203 = vshra.s32 %v201, 16
      %v204 = vcvt.s32.f32 %v202
      %v205 = vcvt.s32.f32 %v203
      %206 = vmin.xlane.f32.xlu0 %v205
      %v207 = vpop.xlane.xlu0 %206
      %vm208 = vcmp.eq.f32.partialorder %v205, %v207
      %v209 = vsel %vm208, %v204, inf
      %210 = vmin.xlane.f32.xlu0 %v209
      %v211 = vpop.xlane.xlu0 %210
      %v212 = vcvt.f32.s32 %v211
      %v213 = vcvt.f32.s32 %v207
      %v214 = vshll.u32 %v213, 16
      %v215 = vadd.s32 %v214, %v212
      %vm216 = vcmp.lt.s32.totalorder %v215, 8
      %v217 = vsel %vm216, %v215, %v198
      %vm218 = vcmask 1024
      %219 = vst.msk [vmem:[%s4] sm:$0x3] %vm218, %v217
    $region29: #{tpu_custom_call.1} parent=1 // pred_fallthru
      _
    // Predicated region
    $region30: #{tpu_custom_call.1} parent=1 // pred_check
      _
    $region31: #{tpu_custom_call.1} parent=1 // pred_check_branch
      %221 = sbr.rel (0) target = $region33
    $region32: #{tpu_custom_call.1} parent=1 // pred_region
      %s223 = ssub.s32 32, 32
      %224 = vsyncadd [#allocation5], %s223
      %s226 = sshll.u32 [#allocation8], 4
      %s227 = int_to_ptr.vmem [resolvable:$true] %s226
      %229 = dma.vmem_to_hbm [thread:$0]  %s227, 32, %s3, [#allocation5]
    $region33: #{tpu_custom_call.1} parent=1 // pred_fallthru
      _
    // Predicated region
    $region34: #{tpu_custom_call.1} parent=1 // pred_check
      _
    $region35: #{tpu_custom_call.1} parent=1 // pred_check_branch
      %231 = sbr.rel (0) target = $region37
    $region36: #{tpu_custom_call.1} parent=1 // pred_region
      _
    $region37: #{tpu_custom_call.1} parent=1 // pred_fallthru
      _
    // Predicated region
    $region38: #{tpu_custom_call.1} parent=1 // pred_check
      _
    $region39: #{tpu_custom_call.1} parent=1 // pred_check_branch
      %233 = sbr.rel (0) target = $region41
    $region40: #{tpu_custom_call.1} parent=1 // pred_region
      %234 = dma.done [#allocation5], 32
    $region41: #{tpu_custom_call.1} parent=1 // pred_fallthru
      _
    // Predicated region
    $region42: #{tpu_custom_call.1} parent=1 // pred_check
      _
    $region43: #{tpu_custom_call.1} parent=1 // pred_check_branch
      %236 = sbr.rel (0) target = $region45
    $region44: #{tpu_custom_call.1} parent=1 // pred_region
      _
    $region45: #{tpu_custom_call.1} parent=1 // pred_fallthru
      _
    %237 = vsyncpa [#allocation4], 1
    %238 = vsyncpa [#allocation7], 1
    %239 = vsyncpa [#allocation5], 1

</llo_original>
